<compile_context>
chip_gen: v7x
topology: tpu7x:2x2x1
jax: 0.10.0
libtpu: 0.0.40
codegen_flags: <defaults>
</compile_context>

<pallas_src>
import functools

import jax
import jax.numpy as jnp
from jax.experimental import pallas as pl
from jax.experimental.pallas import tpu as pltpu


def _ranking_loss_kernel(logits_ref, costs_ref, out_ref, *, top_k, batch_size):
    # Blocks are (N, TILE_B): solvers on sublanes, batch on lanes.
    logits = logits_ref[...].astype(jnp.float32)
    costs = costs_ref[...].astype(jnp.float32)
    N, TB = logits.shape

    row = jax.lax.broadcasted_iota(jnp.int32, (N, TB), 0)   # solver index
    mask = jnp.ones((N, TB), dtype=jnp.bool_)               # solvers still kept
    BIG = jnp.float32(3.0e38)

    # Hoisted softmax pieces: one exp pass + one sublane sum, reused/updated per step.
    gmax = jnp.max(logits, axis=0, keepdims=True)            # (1, TB)
    e = jnp.exp(logits - gmax)                               # (N, TB)
    s = jnp.sum(e, axis=0, keepdims=True)                    # (1, TB)

    loss_cols = jnp.zeros((1, TB), jnp.float32)

    # top_k is a small static constant -> unrolled Python loop.
    for i in range(top_k):
        # (i+1)-th smallest cost per column == min over solvers still in the mask.
        masked_cost = jnp.where(mask, costs, BIG)
        min_val = jnp.min(masked_cost, axis=0, keepdims=True)
        is_min = masked_cost == min_val
        # Tie-break: lowest solver index.
        min_idx = jnp.min(jnp.where(is_min, row, N), axis=0, keepdims=True)
        sel_onehot = row == min_idx

        # Logit at the label position (the surviving minimum-cost solver).
        sel_logit = jnp.sum(jnp.where(sel_onehot, logits, 0.0), axis=0, keepdims=True)

        # logsumexp over the kept logits (the top num_solvers - i by cost).
        lse = gmax + jnp.log(s)
        loss_cols = loss_cols + (lse - sel_logit)

        if i + 1 < top_k:
            # Drop the current minimum-cost solver for the next iteration:
            # remove its exp term from the running softmax denominator.
            # (Assumes kept logits stay within f32 exp range of the global max,
            #  which holds for any sane NN logits.)
            s = s - jnp.sum(jnp.where(sel_onehot, e, 0.0), axis=0, keepdims=True)
            mask = jnp.logical_and(mask, jnp.logical_not(sel_onehot))

    # Zero out padded batch columns (only relevant when B was padded to the tile size).
    if batch_size % TB:
        col = jax.lax.broadcasted_iota(jnp.int32, (1, TB), 1)
        gcol = pl.program_id(0) * TB + col
        loss_cols = jnp.where(gcol < batch_size, loss_cols, 0.0)

    out_ref[...] = loss_cols


def ranking_loss(logits, costs, *, top_k, max_tile_b=512):
    """logits, costs: (batch, num_solvers) float arrays. Returns scalar f32 loss."""
    assert logits.shape == costs.shape and logits.ndim == 2
    B, N = logits.shape
    assert 1 <= top_k <= N, "top_k must be in [1, num_solvers]"

    # Batch tile on the lane axis: multiple of 128, capped at max_tile_b.
    # With small N the VMEM footprint (2 inputs x 2 pipeline buffers x N*TILE_B*4B)
    # stays far below default scoped-VMEM limits on v5e/v6e/v7x.
    b128 = -(-B // 128) * 128
    tile_b = min(max_tile_b, b128)
    b_pad = -(-B // tile_b) * tile_b
    num_tiles = b_pad // tile_b

    # Present the data as (N, B_pad): batch maps to the 128-lane axis.
    def prep(x):
        x = jnp.asarray(x).T
        if b_pad != B:
            x = jnp.pad(x, ((0, 0), (0, b_pad - B)))
        return x

    logits_t = prep(logits)
    costs_t = prep(costs)

    kernel = functools.partial(_ranking_loss_kernel, top_k=top_k, batch_size=B)
    per_col = pl.pallas_call(
        kernel,
        out_shape=jax.ShapeDtypeStruct((1, b_pad), jnp.float32),
        grid=(num_tiles,),
        in_specs=[
            pl.BlockSpec((N, tile_b), lambda b: (0, b)),
            pl.BlockSpec((N, tile_b), lambda b: (0, b)),
        ],
        out_specs=pl.BlockSpec((1, tile_b), lambda b: (0, b)),
        compiler_params=pltpu.CompilerParams(
            dimension_semantics=("parallel",),
        ),
    )(logits_t, costs_t)

    # Global-B normalization applied exactly once (sum of per-column losses / B).
    return jnp.sum(per_col) / jnp.float32(B)


def ranking_loss_ref(logits, costs, *, top_k):
    """Pure-JAX reference mirroring the PyTorch forward literally."""
    num_solvers = costs.shape[1]
    loss = jnp.float32(0.0)
    for i in range(top_k):
        cur_cost, ind = jax.lax.top_k(costs, num_solvers - i)
        cur_label = jnp.argmin(cur_cost, axis=1)
        cur_logits = jnp.take_along_axis(logits, ind, axis=1)
        logp = jax.nn.log_softmax(cur_logits, axis=1)
        picked = jnp.take_along_axis(logp, cur_label[:, None], axis=1)
        loss = loss + (-jnp.mean(picked))
    return loss


if __name__ == "__main__":
    # Small shapes consistent with the module (batch, num_solvers).
    k1, k2 = jax.random.split(jax.random.PRNGKey(0))
    batch, num_solvers, top_k = 8, 8, 3
    logits = jax.random.normal(k1, (batch, num_solvers), dtype=jnp.float32)
    costs = jax.random.uniform(k2, (batch, num_solvers), dtype=jnp.float32)

    out = jax.block_until_ready(ranking_loss(logits, costs, top_k=top_k))
    ref = ranking_loss_ref(logits, costs, top_k=top_k)
    assert jnp.allclose(out, ref, atol=1e-5, rtol=1e-4), (out, ref)

    # Second check: exercises multiple batch tiles, lane padding, and N not a
    # multiple of 8 (full-dim sublane block).
    k3, k4 = jax.random.split(jax.random.PRNGKey(1))
    batch2, num_solvers2, top_k2 = 600, 12, 4
    logits2 = jax.random.normal(k3, (batch2, num_solvers2), dtype=jnp.float32)
    costs2 = jax.random.uniform(k4, (batch2, num_solvers2), dtype=jnp.float32)

    out2 = jax.block_until_ready(ranking_loss(logits2, costs2, top_k=top_k2))
    ref2 = ranking_loss_ref(logits2, costs2, top_k=top_k2)
    assert jnp.allclose(out2, ref2, atol=1e-5, rtol=1e-4), (out2, ref2)

    print("KERNEL_OK")
</pallas_src>

<mosaic_0001>
module attributes {stable_mosaic.version = 11 : i64} {
  func.func @_ranking_loss_kernel(%arg0: i32, %arg1: memref<8x128xf32, #tpu.memory_space<vmem>>, %arg2: memref<8x128xf32, #tpu.memory_space<vmem>>, %arg3: memref<1x128xf32, #tpu.memory_space<vmem>>) attributes {dimension_semantics = [#tpu.dimension_semantics<parallel>], iteration_bounds = array<i64: 1>, scalar_prefetch = 0 : i64, scratch_operands = 0 : i64, tpu.core_type = #tpu.core_type<tc>, window_params = [{transform_indices = @transform_0, window_bounds = array<i64: 8, 128>}, {transform_indices = @transform_1, window_bounds = array<i64: 8, 128>}, {transform_indices = @transform_2, window_bounds = array<i64: 1, 128>}]} {
    %c0 = arith.constant 0 : index
    %c0_0 = arith.constant 0 : index
    %0 = vector.load %arg1[%c0, %c0_0] : memref<8x128xf32, #tpu.memory_space<vmem>>, vector<8x128xf32>
    %c0_1 = arith.constant 0 : index
    %c0_2 = arith.constant 0 : index
    %1 = vector.load %arg2[%c0_1, %c0_2] : memref<8x128xf32, #tpu.memory_space<vmem>>, vector<8x128xf32>
    %2 = tpu.iota {dimensions = array<i32: 0>} : vector<8x128xi32>
    %true = arith.constant true
    %3 = vector.broadcast %true : i1 to vector<8x128xi1>
    %cst = arith.constant dense<0xFF800000> : vector<128xf32>
    %4 = vector.multi_reduction <maximumf>, %0, %cst [0] : vector<8x128xf32> to vector<128xf32>
    %5 = vector.shape_cast %4 : vector<128xf32> to vector<1x128xf32>
    %6 = vector.broadcast %5 : vector<1x128xf32> to vector<8x128xf32>
    %7 = arith.subf %0, %6 : vector<8x128xf32>
    %8 = math.exp %7 : vector<8x128xf32>
    %cst_3 = arith.constant dense<0.000000e+00> : vector<128xf32>
    %9 = vector.multi_reduction <add>, %8, %cst_3 [0] : vector<8x128xf32> to vector<128xf32>
    %10 = vector.shape_cast %9 : vector<128xf32> to vector<1x128xf32>
    %cst_4 = arith.constant 0.000000e+00 : f32
    %11 = vector.broadcast %cst_4 : f32 to vector<1x128xf32>
    %cst_5 = arith.constant 3.000000e+38 : f32
    %12 = vector.broadcast %cst_5 : f32 to vector<8x128xf32>
    %13 = arith.select %3, %1, %12 : vector<8x128xi1>, vector<8x128xf32>
    %cst_6 = arith.constant dense<0x7F800000> : vector<128xf32>
    %14 = vector.multi_reduction <minimumf>, %13, %cst_6 [0] : vector<8x128xf32> to vector<128xf32>
    %15 = vector.shape_cast %14 : vector<128xf32> to vector<1x128xf32>
    %16 = vector.broadcast %15 : vector<1x128xf32> to vector<8x128xf32>
    %17 = arith.cmpf oeq, %13, %16 : vector<8x128xf32>
    %c8_i32 = arith.constant 8 : i32
    %18 = vector.broadcast %c8_i32 : i32 to vector<8x128xi32>
    %19 = arith.select %17, %2, %18 : vector<8x128xi1>, vector<8x128xi32>
    %cst_7 = arith.constant dense<2147483647> : vector<128xi32>
    %20 = vector.multi_reduction <minsi>, %19, %cst_7 [0] : vector<8x128xi32> to vector<128xi32>
    %21 = vector.shape_cast %20 : vector<128xi32> to vector<1x128xi32>
    %22 = vector.broadcast %21 : vector<1x128xi32> to vector<8x128xi32>
    %23 = arith.cmpi eq, %2, %22 : vector<8x128xi32>
    %cst_8 = arith.constant 0.000000e+00 : f32
    %24 = vector.broadcast %cst_8 : f32 to vector<8x128xf32>
    %25 = arith.select %23, %0, %24 : vector<8x128xi1>, vector<8x128xf32>
    %cst_9 = arith.constant dense<0.000000e+00> : vector<128xf32>
    %26 = vector.multi_reduction <add>, %25, %cst_9 [0] : vector<8x128xf32> to vector<128xf32>
    %27 = vector.shape_cast %26 : vector<128xf32> to vector<1x128xf32>
    %28 = math.log %10 : vector<1x128xf32>
    %29 = arith.addf %5, %28 : vector<1x128xf32>
    %30 = arith.subf %29, %27 : vector<1x128xf32>
    %31 = arith.addf %11, %30 : vector<1x128xf32>
    %cst_10 = arith.constant 0.000000e+00 : f32
    %32 = vector.broadcast %cst_10 : f32 to vector<8x128xf32>
    %33 = arith.select %23, %8, %32 : vector<8x128xi1>, vector<8x128xf32>
    %cst_11 = arith.constant dense<0.000000e+00> : vector<128xf32>
    %34 = vector.multi_reduction <add>, %33, %cst_11 [0] : vector<8x128xf32> to vector<128xf32>
    %35 = vector.shape_cast %34 : vector<128xf32> to vector<1x128xf32>
    %36 = arith.subf %10, %35 : vector<1x128xf32>
    %cst_12 = arith.constant dense<true> : vector<8x128xi1>
    %37 = arith.xori %23, %cst_12 : vector<8x128xi1>
    %38 = arith.andi %3, %37 : vector<8x128xi1>
    %cst_13 = arith.constant 3.000000e+38 : f32
    %39 = vector.broadcast %cst_13 : f32 to vector<8x128xf32>
    %40 = arith.select %38, %1, %39 : vector<8x128xi1>, vector<8x128xf32>
    %cst_14 = arith.constant dense<0x7F800000> : vector<128xf32>
    %41 = vector.multi_reduction <minimumf>, %40, %cst_14 [0] : vector<8x128xf32> to vector<128xf32>
    %42 = vector.shape_cast %41 : vector<128xf32> to vector<1x128xf32>
    %43 = vector.broadcast %42 : vector<1x128xf32> to vector<8x128xf32>
    %44 = arith.cmpf oeq, %40, %43 : vector<8x128xf32>
    %c8_i32_15 = arith.constant 8 : i32
    %45 = vector.broadcast %c8_i32_15 : i32 to vector<8x128xi32>
    %46 = arith.select %44, %2, %45 : vector<8x128xi1>, vector<8x128xi32>
    %cst_16 = arith.constant dense<2147483647> : vector<128xi32>
    %47 = vector.multi_reduction <minsi>, %46, %cst_16 [0] : vector<8x128xi32> to vector<128xi32>
    %48 = vector.shape_cast %47 : vector<128xi32> to vector<1x128xi32>
    %49 = vector.broadcast %48 : vector<1x128xi32> to vector<8x128xi32>
    %50 = arith.cmpi eq, %2, %49 : vector<8x128xi32>
    %cst_17 = arith.constant 0.000000e+00 : f32
    %51 = vector.broadcast %cst_17 : f32 to vector<8x128xf32>
    %52 = arith.select %50, %0, %51 : vector<8x128xi1>, vector<8x128xf32>
    %cst_18 = arith.constant dense<0.000000e+00> : vector<128xf32>
    %53 = vector.multi_reduction <add>, %52, %cst_18 [0] : vector<8x128xf32> to vector<128xf32>
    %54 = vector.shape_cast %53 : vector<128xf32> to vector<1x128xf32>
    %55 = math.log %36 : vector<1x128xf32>
    %56 = arith.addf %5, %55 : vector<1x128xf32>
    %57 = arith.subf %56, %54 : vector<1x128xf32>
    %58 = arith.addf %31, %57 : vector<1x128xf32>
    %cst_19 = arith.constant 0.000000e+00 : f32
    %59 = vector.broadcast %cst_19 : f32 to vector<8x128xf32>
    %60 = arith.select %50, %8, %59 : vector<8x128xi1>, vector<8x128xf32>
    %cst_20 = arith.constant dense<0.000000e+00> : vector<128xf32>
    %61 = vector.multi_reduction <add>, %60, %cst_20 [0] : vector<8x128xf32> to vector<128xf32>
    %62 = vector.shape_cast %61 : vector<128xf32> to vector<1x128xf32>
    %63 = arith.subf %36, %62 : vector<1x128xf32>
    %cst_21 = arith.constant dense<true> : vector<8x128xi1>
    %64 = arith.xori %50, %cst_21 : vector<8x128xi1>
    %65 = arith.andi %38, %64 : vector<8x128xi1>
    %cst_22 = arith.constant 3.000000e+38 : f32
    %66 = vector.broadcast %cst_22 : f32 to vector<8x128xf32>
    %67 = arith.select %65, %1, %66 : vector<8x128xi1>, vector<8x128xf32>
    %cst_23 = arith.constant dense<0x7F800000> : vector<128xf32>
    %68 = vector.multi_reduction <minimumf>, %67, %cst_23 [0] : vector<8x128xf32> to vector<128xf32>
    %69 = vector.shape_cast %68 : vector<128xf32> to vector<1x128xf32>
    %70 = vector.broadcast %69 : vector<1x128xf32> to vector<8x128xf32>
    %71 = arith.cmpf oeq, %67, %70 : vector<8x128xf32>
    %c8_i32_24 = arith.constant 8 : i32
    %72 = vector.broadcast %c8_i32_24 : i32 to vector<8x128xi32>
    %73 = arith.select %71, %2, %72 : vector<8x128xi1>, vector<8x128xi32>
    %cst_25 = arith.constant dense<2147483647> : vector<128xi32>
    %74 = vector.multi_reduction <minsi>, %73, %cst_25 [0] : vector<8x128xi32> to vector<128xi32>
    %75 = vector.shape_cast %74 : vector<128xi32> to vector<1x128xi32>
    %76 = vector.broadcast %75 : vector<1x128xi32> to vector<8x128xi32>
    %77 = arith.cmpi eq, %2, %76 : vector<8x128xi32>
    %cst_26 = arith.constant 0.000000e+00 : f32
    %78 = vector.broadcast %cst_26 : f32 to vector<8x128xf32>
    %79 = arith.select %77, %0, %78 : vector<8x128xi1>, vector<8x128xf32>
    %cst_27 = arith.constant dense<0.000000e+00> : vector<128xf32>
    %80 = vector.multi_reduction <add>, %79, %cst_27 [0] : vector<8x128xf32> to vector<128xf32>
    %81 = vector.shape_cast %80 : vector<128xf32> to vector<1x128xf32>
    %82 = math.log %63 : vector<1x128xf32>
    %83 = arith.addf %5, %82 : vector<1x128xf32>
    %84 = arith.subf %83, %81 : vector<1x128xf32>
    %85 = arith.addf %58, %84 : vector<1x128xf32>
    %86 = tpu.iota {dimensions = array<i32: 1>} : vector<1x128xi32>
    %c128_i32 = arith.constant 128 : i32
    %87 = arith.muli %arg0, %c128_i32 : i32
    %88 = vector.broadcast %87 : i32 to vector<1x128xi32>
    %89 = arith.addi %88, %86 : vector<1x128xi32>
    %c8_i32_28 = arith.constant 8 : i32
    %90 = vector.broadcast %c8_i32_28 : i32 to vector<1x128xi32>
    %91 = arith.cmpi slt, %89, %90 : vector<1x128xi32>
    %cst_29 = arith.constant 0.000000e+00 : f32
    %92 = vector.broadcast %cst_29 : f32 to vector<1x128xf32>
    %93 = arith.select %91, %85, %92 : vector<1x128xi1>, vector<1x128xf32>
    %c0_30 = arith.constant 0 : index
    %c0_31 = arith.constant 0 : index
    %94 = vector.load %arg3[%c0_30, %c0_31] : memref<1x128xf32, #tpu.memory_space<vmem>>, vector<1x128xf32>
    tpu.vector_store %arg3[%c0_30, %c0_31], %93 {strides = array<i32>} : memref<1x128xf32, #tpu.memory_space<vmem>>, vector<1x128xf32>,
    return
  }
  func.func @transform_0(%arg0: i32) -> (i32, i32) {
    %c0_i32 = arith.constant 0 : i32
    %c0_i32_0 = arith.constant 0 : i32
    return %c0_i32, %arg0 : i32, i32
  }
  func.func @transform_1(%arg0: i32) -> (i32, i32) {
    %c0_i32 = arith.constant 0 : i32
    %c0_i32_0 = arith.constant 0 : i32
    return %c0_i32, %arg0 : i32, i32
  }
  func.func @transform_2(%arg0: i32) -> (i32, i32) {
    %c0_i32 = arith.constant 0 : i32
    %c0_i32_0 = arith.constant 0 : i32
    return %c0_i32, %arg0 : i32, i32
  }
}

</mosaic_0001>

<llo_original>
// kernel: tpu_custom_call.1
$region0: #{tpu_custom_call.1}
  #allocation0 [shape = 'u32[]', space=smem, size = 0x4, offset = 0x4, fixed_abs, tag = 'smem constant byte address 0x4 - core index']
  #allocation1 [shape = 'u32[144,128]{1,0:T(1,128)}', space=vmem, size = 0x12000, scoped, tag = 'internal scratch']
  %s0 = inlined_call_operand.hbm [shape: f32[8,128], index: 0, kind: input, shape index: {}]
  %s1 = inlined_call_operand.hbm [shape: f32[8,128], index: 1, kind: input, shape index: {}]
  %s2 = inlined_call_operand.hbm [shape: f32[1,128], index: 2, kind: output, shape index: {}]
  %s3 = sld [smem:[#allocation0]]
  $region26: #{tpu_custom_call.1} parent=0
    _
  %s5 = ssub.s32 1, %s3
  %s6 = scalar_select 0, %s5, %s3
  $region1: #{tpu_custom_call.1} parent=0
    #allocation2 [shape = 'u8[4096]{0}', space=vmem, size = 0x1000, scoped, tag = 'input window, operand 0, single buffered']
    #allocation3 [shape = 's32[1]{0}', space=sflag, size = 0x4, scoped, tag = 'scoped memory for tpu_custom_call.1']
    #allocation4 [shape = 's32[1]{0}', space=sflag, size = 0x4, scoped, tag = 'scoped memory for tpu_custom_call.1']
    #allocation5 [shape = 'u8[4096]{0}', space=vmem, size = 0x1000, scoped, tag = 'input window, operand 1, single buffered']
    #allocation6 [shape = 's32[1]{0}', space=sflag, size = 0x4, scoped, tag = 'scoped memory for tpu_custom_call.1']
    #allocation7 [shape = 'u8[512]{0}', space=vmem, size = 0x400, scoped, tag = 'output window, operand 0, single buffered']
    %7 = vsyncpa [#allocation3], 0
    %8 = vsyncpa [#allocation6], 0
    %9 = vsyncpa [#allocation4], 0
    // Predicated region
    $region2: #{tpu_custom_call.1} parent=1 // pred_check
      _
    $region3: #{tpu_custom_call.1} parent=1 // pred_check_branch
      %11 = sbr.rel (0) target = $region5
    $region4: #{tpu_custom_call.1} parent=1 // pred_region
      %s13 = ssub.s32 128, 128
      %14 = vsyncadd [#allocation3], %s13
      %s16 = sshll.u32 [#allocation2], 4
      %s17 = int_to_ptr.vmem [resolvable:$true] %s16
      %19 = dma.hbm_to_vmem [thread:$0]  %s0, 128, %s17, [#allocation3]
    $region5: #{tpu_custom_call.1} parent=1 // pred_fallthru
      _
    // Predicated region
    $region6: #{tpu_custom_call.1} parent=1 // pred_check
      _
    $region7: #{tpu_custom_call.1} parent=1 // pred_check_branch
      %21 = sbr.rel (0) target = $region9
    $region8: #{tpu_custom_call.1} parent=1 // pred_region
      %s23 = ssub.s32 128, 128
      %24 = vsyncadd [#allocation6], %s23
      %s26 = sshll.u32 [#allocation5], 4
      %s27 = int_to_ptr.vmem [resolvable:$true] %s26
      %29 = dma.hbm_to_vmem [thread:$0]  %s1, 128, %s27, [#allocation6]
    $region9: #{tpu_custom_call.1} parent=1 // pred_fallthru
      _
    // Predicated region
    $region10: #{tpu_custom_call.1} parent=1 // pred_check
      _
    $region11: #{tpu_custom_call.1} parent=1 // pred_check_branch
      %31 = sbr.rel (0) target = $region13
    $region12: #{tpu_custom_call.1} parent=1 // pred_region
      %32 = dma.done [#allocation3], 128
    $region13: #{tpu_custom_call.1} parent=1 // pred_fallthru
      _
    // Predicated region
    $region14: #{tpu_custom_call.1} parent=1 // pred_check
      _
    $region15: #{tpu_custom_call.1} parent=1 // pred_check_branch
      %34 = sbr.rel (0) target = $region17
    $region16: #{tpu_custom_call.1} parent=1 // pred_region
      %35 = dma.done [#allocation6], 128
    $region17: #{tpu_custom_call.1} parent=1 // pred_fallthru
      _
    %v36 = vld [vmem:[#allocation2] sm:$0xff]
    %v37 = vld [vmem:[#allocation5] sm:$0xff]
    %v38 = vlaneseq
    %v39 = vshrl.u32 %v38, 7
    %v40 = vrot.slane %v36, 4
    %v41 = vmax.f32 %v36, %v40
    %v42 = vrot.slane %v41, 2
    %v43 = vmax.f32 %v41, %v42
    %v44 = vrot.slane %v43, 1
    %v45 = vmax.f32 %v43, %v44
    %v46 = vsub.f32 %v36, %v45
    %v47 = vmul.f32 %v46, 1.442695
    %v48 = vpow.pop %v47
    %v49 = vrot.slane %v48, 4
    %v50 = vadd.f32 %v48, %v49
    %v51 = vrot.slane %v50, 2
    %v52 = vadd.f32 %v50, %v51
    %v53 = vrot.slane %v52, 1
    %v54 = vadd.f32 %v52, %v53
    %v55 = vrot.slane %v37, 4
    %v56 = vmin.f32 %v37, %v55
    %v57 = vrot.slane %v56, 2
    %v58 = vmin.f32 %v56, %v57
    %v59 = vrot.slane %v58, 1
    %v60 = vmin.f32 %v58, %v59
    %vm61 = vcmp.eq.f32.partialorder %v37, %v60
    %v62 = vsel %vm61, %v39, 8
    %v63 = vrot.slane %v62, 4
    %vm64 = vcmp.lt.s32.totalorder %v62, %v63
    %v65 = vsel %vm64, %v62, %v63
    %v66 = vrot.slane %v65, 2
    %vm67 = vcmp.lt.s32.totalorder %v65, %v66
    %v68 = vsel %vm67, %v65, %v66
    %v69 = vrot.slane %v68, 1
    %vm70 = vcmp.lt.s32.totalorder %v68, %v69
    %v71 = vsel %vm70, %v68, %v69
    %vm72 = vcmp.eq.s32.totalorder %v39, %v71
    %v73 = vsel %vm72, %v36, 0.0
    %v74 = vrot.slane %v73, 4
    %v75 = vadd.f32 %v73, %v74
    %v76 = vrot.slane %v75, 2
    %v77 = vadd.f32 %v75, %v76
    %v78 = vrot.slane %v77, 1
    %v79 = vadd.f32 %v77, %v78
    %v80 = vlog2.pop %v54
    %v81 = vmul.f32 %v80, 0.6931472
    %v82 = vadd.f32 %v45, %v81
    %v83 = vsub.f32 %v82, %v79
    %v84 = vadd.f32 %v83, 0.0
    %v85 = vsel %vm72, %v48, 0.0
    %v86 = vrot.slane %v85, 4
    %v87 = vadd.f32 %v85, %v86
    %v88 = vrot.slane %v87, 2
    %v89 = vadd.f32 %v87, %v88
    %v90 = vrot.slane %v89, 1
    %v91 = vadd.f32 %v89, %v90
    %v92 = vsub.f32 %v54, %v91
    %vm93 = vmxor %vm72, 1
    %v94 = vsel %vm93, %v37, 3e+38
    %v95 = vrot.slane %v94, 4
    %v96 = vmin.f32 %v94, %v95
    %v97 = vrot.slane %v96, 2
    %v98 = vmin.f32 %v96, %v97
    %v99 = vrot.slane %v98, 1
    %v100 = vmin.f32 %v98, %v99
    %vm101 = vcmp.eq.f32.partialorder %v94, %v100
    %v102 = vsel %vm101, %v39, 8
    %v103 = vrot.slane %v102, 4
    %vm104 = vcmp.lt.s32.totalorder %v102, %v103
    %v105 = vsel %vm104, %v102, %v103
    %v106 = vrot.slane %v105, 2
    %vm107 = vcmp.lt.s32.totalorder %v105, %v106
    %v108 = vsel %vm107, %v105, %v106
    %v109 = vrot.slane %v108, 1
    %vm110 = vcmp.lt.s32.totalorder %v108, %v109
    %v111 = vsel %vm110, %v108, %v109
    %vm112 = vcmp.eq.s32.totalorder %v39, %v111
    %v113 = vsel %vm112, %v36, 0.0
    %v114 = vrot.slane %v113, 4
    %v115 = vadd.f32 %v113, %v114
    %v116 = vrot.slane %v115, 2
    %v117 = vadd.f32 %v115, %v116
    %v118 = vrot.slane %v117, 1
    %v119 = vadd.f32 %v117, %v118
    %v120 = vlog2.pop %v92
    %v121 = vmul.f32 %v120, 0.6931472
    %v122 = vadd.f32 %v45, %v121
    %v123 = vsub.f32 %v122, %v119
    %v124 = vadd.f32 %v84, %v123
    %v125 = vsel %vm112, %v48, 0.0
    %v126 = vrot.slane %v125, 4
    %v127 = vadd.f32 %v125, %v126
    %v128 = vrot.slane %v127, 2
    %v129 = vadd.f32 %v127, %v128
    %v130 = vrot.slane %v129, 1
    %v131 = vadd.f32 %v129, %v130
    %v132 = vsub.f32 %v92, %v131
    %vm133 = vmxor %vm112, 1
    %vm134 = vmand %vm93, %vm133
    %v135 = vsel %vm134, %v37, 3e+38
    %v136 = vrot.slane %v135, 4
    %v137 = vmin.f32 %v135, %v136
    %v138 = vrot.slane %v137, 2
    %v139 = vmin.f32 %v137, %v138
    %v140 = vrot.slane %v139, 1
    %v141 = vmin.f32 %v139, %v140
    %vm142 = vcmp.eq.f32.partialorder %v135, %v141
    %v143 = vsel %vm142, %v39, 8
    %v144 = vrot.slane %v143, 4
    %vm145 = vcmp.lt.s32.totalorder %v143, %v144
    %v146 = vsel %vm145, %v143, %v144
    %v147 = vrot.slane %v146, 2
    %vm148 = vcmp.lt.s32.totalorder %v146, %v147
    %v149 = vsel %vm148, %v146, %v147
    %v150 = vrot.slane %v149, 1
    %vm151 = vcmp.lt.s32.totalorder %v149, %v150
    %v152 = vsel %vm151, %v149, %v150
    %vm153 = vcmp.eq.s32.totalorder %v39, %v152
    %v154 = vsel %vm153, %v36, 0.0
    %v155 = vrot.slane %v154, 4
    %v156 = vadd.f32 %v154, %v155
    %v157 = vrot.slane %v156, 2
    %v158 = vadd.f32 %v156, %v157
    %v159 = vrot.slane %v158, 1
    %v160 = vadd.f32 %v158, %v159
    %v161 = vlog2.pop %v132
    %v162 = vmul.f32 %v161, 0.6931472
    %v163 = vadd.f32 %v45, %v162
    %v164 = vsub.f32 %v163, %v160
    %v165 = vadd.f32 %v124, %v164
    %v166 = vlaneseq
    %v167 = vand.u32 %v166, 127
    %s168 = smul.u32 0, 128
    %v169 = vstv %s168
    %v170 = vadd.s32 %v169, %v167
    %vm171 = vcmp.lt.s32.totalorder %v170, 8
    %v172 = vsel %vm171, %v165, 0.0
    %173 = vst [vmem:[#allocation7] sm:$0x1] %v172
    // Predicated region
    $region18: #{tpu_custom_call.1} parent=1 // pred_check
      _
    $region19: #{tpu_custom_call.1} parent=1 // pred_check_branch
      %175 = sbr.rel (0) target = $region21
    $region20: #{tpu_custom_call.1} parent=1 // pred_region
      %s177 = ssub.s32 16, 16
      %178 = vsyncadd [#allocation4], %s177
      %s180 = sshll.u32 [#allocation7], 4
      %s181 = int_to_ptr.vmem [resolvable:$true] %s180
      %183 = dma.vmem_to_hbm [thread:$0]  %s181, 16, %s2, [#allocation4]
    $region21: #{tpu_custom_call.1} parent=1 // pred_fallthru
      _
    // Predicated region
    $region22: #{tpu_custom_call.1} parent=1 // pred_check
      _
    $region23: #{tpu_custom_call.1} parent=1 // pred_check_branch
      %185 = sbr.rel (0) target = $region25
    $region24: #{tpu_custom_call.1} parent=1 // pred_region
      %186 = dma.done [#allocation4], 16
    $region25: #{tpu_custom_call.1} parent=1 // pred_fallthru
      _
    %187 = vsyncpa [#allocation3], 1
    %188 = vsyncpa [#allocation6], 1
    %189 = vsyncpa [#allocation4], 1

</llo_original>
